<compile_context>
chip_gen: v5e
topology: v5e:2x2
jax: 0.10.0
libtpu: 0.0.40
codegen_flags: <defaults>
</compile_context>

<pallas_src>
import jax
import jax.numpy as jnp
from jax.experimental import pallas as pl
from jax.experimental.pallas import tpu as pltpu

_LANE = 128
_SUBLANE = 8


def _tv_kernel(x_ref, h_out_ref, w_out_ref):
    """Unweighted TV: per-block partial sums of |dx/dh| and |dx/dw|."""
    x = x_ref[...].astype(jnp.float32)                        # (B, H, W)
    # H-direction term, fully reduced before W-direction temporaries exist.
    h_sum = jnp.sum(jnp.abs(x[:, 1:, :] - x[:, :-1, :]))
    h_out_ref[...] = jnp.broadcast_to(h_sum, h_out_ref.shape)
    w_sum = jnp.sum(jnp.abs(x[:, :, 1:] - x[:, :, :-1]))
    w_out_ref[...] = jnp.broadcast_to(w_sum, w_out_ref.shape)


def _tv_weighted_kernel(x_ref, wm_ref, h_out_ref, w_out_ref):
    """Weighted TV: weight = 1/exp(|grad(weight_map)|) = exp(-|grad|)."""
    x = x_ref[...].astype(jnp.float32)                        # (B, H, W)
    wm = wm_ref[...].astype(jnp.float32)                      # (B, H, W)
    # H-direction first (exp runs on the EUP slot -> free next to the DMA).
    gh = jnp.abs(wm[:, 1:, :] - wm[:, :-1, :])
    dh = jnp.abs(x[:, 1:, :] - x[:, :-1, :])
    h_sum = jnp.sum(jnp.exp(-gh) * dh)
    h_out_ref[...] = jnp.broadcast_to(h_sum, h_out_ref.shape)
    # W-direction second, so only one direction's temporaries are live at once.
    gw = jnp.abs(wm[:, :, 1:] - wm[:, :, :-1])
    dw = jnp.abs(x[:, :, 1:] - x[:, :, :-1])
    w_sum = jnp.sum(jnp.exp(-gw) * dw)
    w_out_ref[...] = jnp.broadcast_to(w_sum, w_out_ref.shape)


def _vmem_limit_bytes():
    """Scoped-VMEM limit sized to the actual generation's per-core VMEM."""
    try:
        cap = int(pltpu.get_tpu_info().vmem_capacity_bytes)
    except Exception:
        cap = 64 * 1024 * 1024        # conservative fallback (v7x per-TC size)
    # ~60% of physical VMEM, capped at 64 MiB: ~38 MiB on v7x (64 MiB/TC),
    # 64 MiB on v5e/v6e (128 MiB physical; 32 MiB is only the scoped default).
    return int(min(cap * 3 // 5, 64 * 1024 * 1024))


def _planes_per_block(h, w, itemsize, nc, n_inputs, vmem_limit):
    """Largest B (planes per grid step) that (a) fits the VMEM budget,
    (b) divides N*C exactly (no padding, no tail masking), and (c) leaves
    >= 2 grid steps so both v7x TensorCores get work."""
    lane_w = pl.cdiv(w, _LANE) * _LANE            # lane dim pads to 128 in VMEM
    sub_h = pl.cdiv(h, _SUBLANE) * _SUBLANE       # sublane dim pads to 8
    plane_in = sub_h * lane_w * itemsize          # streamed bytes / plane / input
    plane_f32 = sub_h * lane_w * 4                # f32 intermediate bytes / plane
    # Peak per-plane VMEM: double-buffered streamed inputs + live f32
    # intermediates (cast copies + one direction's slice/diff temps at a time).
    k_interm = 4 if n_inputs == 1 else 8
    per_plane = n_inputs * 2 * plane_in + k_interm * plane_f32
    budget = (vmem_limit * 3) // 4                # headroom for compiler scratch
    b_max = max(1, budget // per_plane)
    b_max = min(b_max, nc)
    if nc >= 2:
        b_max = min(b_max, nc // 2)               # g >= 2: keep both v7x TCs busy
    b_max = max(1, int(b_max))
    # Largest divisor of nc not exceeding b_max -> every block fully in-bounds.
    b = 1
    for d in range(b_max, 0, -1):
        if nc % d == 0:
            b = d
            break
    return int(b)


def tv_loss(x, weight_map=None):
    """Pallas implementation of TVLoss.forward.  x (and weight_map): (N, C, H, W)."""
    n, c, h, w = x.shape
    nc = n * c
    n_inputs = 1 if weight_map is None else 2

    vmem_limit = _vmem_limit_bytes()
    b = _planes_per_block(h, w, jnp.dtype(x.dtype).itemsize, nc, n_inputs, vmem_limit)
    g = nc // b                                   # b divides nc exactly

    plane_spec = pl.BlockSpec((b, h, w), lambda i: (i, 0, 0))
    # Per-block partial sums splatted over a lane-dense (8, 128) tile -> one
    # unmasked vst per output per block.
    part_spec = pl.BlockSpec((1, _SUBLANE, _LANE), lambda i: (i, 0, 0))
    out_shapes = (jax.ShapeDtypeStruct((g, _SUBLANE, _LANE), jnp.float32),
                  jax.ShapeDtypeStruct((g, _SUBLANE, _LANE), jnp.float32))
    cparams = pltpu.CompilerParams(
        dimension_semantics=("parallel",),        # independent blocks, no carry
        vmem_limit_bytes=vmem_limit,
    )

    if weight_map is None:
        kernel = _tv_kernel
        in_specs = [plane_spec]
        operands = (x.reshape(nc, h, w),)
    else:
        # weight_map must share x's NCHW shape (as the PyTorch broadcast in
        # `TVLoss_weight * abs(...)` implies).
        kernel = _tv_weighted_kernel
        in_specs = [plane_spec, plane_spec]
        operands = (x.reshape(nc, h, w), weight_map.reshape(nc, h, w))

    h_part, w_part = pl.pallas_call(
        kernel,
        out_shape=out_shapes,
        grid_spec=pltpu.PrefetchScalarGridSpec(
            num_scalar_prefetch=0,
            grid=(g,),
            in_specs=in_specs,
            out_specs=[part_spec, part_spec],
        ),
        compiler_params=cparams,
    )(*operands)

    # Tiny cross-block reduction + normalization in plain JAX.
    h_tv = jnp.sum(h_part[:, 0, 0])
    w_tv = jnp.sum(w_part[:, 0, 0])
    count_h = c * (h - 1) * w     # _tensor_size(x[:, :, 1:, :]) (batch excluded)
    count_w = c * h * (w - 1)     # _tensor_size(x[:, :, :, 1:])
    return (h_tv / count_h + w_tv / count_w) / n


def _tv_loss_ref(x, weight_map=None):
    """Pure-JAX reference for correctness check."""
    n, c, h, w = x.shape
    dh = jnp.abs(x[:, :, 1:, :] - x[:, :, :-1, :])
    dw = jnp.abs(x[:, :, :, 1:] - x[:, :, :, :-1])
    if weight_map is None:
        wh, ww = 1.0, 1.0
    else:
        wh = jnp.exp(-jnp.abs(weight_map[:, :, 1:, :] - weight_map[:, :, :-1, :]))
        ww = jnp.exp(-jnp.abs(weight_map[:, :, :, 1:] - weight_map[:, :, :, :-1]))
    h_tv = jnp.sum(wh * dh)
    w_tv = jnp.sum(ww * dw)
    count_h = c * (h - 1) * w
    count_w = c * h * (w - 1)
    return (h_tv / count_h + w_tv / count_w) / n


if __name__ == "__main__":
    key = jax.random.PRNGKey(0)
    k1, k2, k3, k4 = jax.random.split(key, 4)

    # Default (unweighted) and weighted paths, even N*C (b=4, g=2).
    x = jax.random.normal(k1, (2, 4, 16, 16), dtype=jnp.float32)
    wm = jax.random.uniform(k2, (2, 4, 16, 16), dtype=jnp.float32)

    out = jax.block_until_ready(tv_loss(x))
    ref = _tv_loss_ref(x)
    assert jnp.allclose(out, ref, rtol=1e-5, atol=1e-5), (out, ref)

    out_w = jax.block_until_ready(tv_loss(x, wm))
    ref_w = _tv_loss_ref(x, wm)
    assert jnp.allclose(out_w, ref_w, rtol=1e-5, atol=1e-5), (out_w, ref_w)

    # Odd N*C (= 9) exercises the divisor-based block selection (b=3, g=3).
    x2 = jax.random.normal(k3, (3, 3, 16, 16), dtype=jnp.float32)
    wm2 = jax.random.uniform(k4, (3, 3, 16, 16), dtype=jnp.float32)

    out2 = jax.block_until_ready(tv_loss(x2))
    ref2 = _tv_loss_ref(x2)
    assert jnp.allclose(out2, ref2, rtol=1e-5, atol=1e-5), (out2, ref2)

    out2_w = jax.block_until_ready(tv_loss(x2, wm2))
    ref2_w = _tv_loss_ref(x2, wm2)
    assert jnp.allclose(out2_w, ref2_w, rtol=1e-5, atol=1e-5), (out2_w, ref2_w)

    print("KERNEL_OK")
</pallas_src>

<mosaic_0001>
module attributes {stable_mosaic.version = 11 : i64} {
  func.func @_tv_kernel(%arg0: i32, %arg1: memref<4x16x16xf32, #tpu.memory_space<vmem>>, %arg2: memref<1x8x128xf32, #tpu.memory_space<vmem>>, %arg3: memref<1x8x128xf32, #tpu.memory_space<vmem>>) attributes {dimension_semantics = [#tpu.dimension_semantics<parallel>], iteration_bounds = array<i64: 2>, scalar_prefetch = 0 : i64, scratch_operands = 0 : i64, tpu.core_type = #tpu.core_type<tc>, window_params = [{transform_indices = @transform_0, window_bounds = array<i64: 4, 16, 16>}, {transform_indices = @transform_1, window_bounds = array<i64: 1, 8, 128>}, {transform_indices = @transform_2, window_bounds = array<i64: 1, 8, 128>}]} {
    %c0 = arith.constant 0 : index
    %c0_0 = arith.constant 0 : index
    %c0_1 = arith.constant 0 : index
    %0 = vector.load %arg1[%c0, %c0_0, %c0_1] : memref<4x16x16xf32, #tpu.memory_space<vmem>>, vector<4x16x16xf32>
    %1 = vector.extract_strided_slice %0 {offsets = [0, 1, 0], sizes = [4, 15, 16], strides = [1, 1, 1]} : vector<4x16x16xf32> to vector<4x15x16xf32>
    %2 = vector.extract_strided_slice %0 {offsets = [0, 0, 0], sizes = [4, 15, 16], strides = [1, 1, 1]} : vector<4x16x16xf32> to vector<4x15x16xf32>
    %3 = arith.subf %1, %2 : vector<4x15x16xf32>
    %4 = math.absf %3 : vector<4x15x16xf32>
    %5 = vector.shape_cast %4 : vector<4x15x16xf32> to vector<1x4x15x16xf32>
    %cst = arith.constant dense<0.000000e+00> : vector<1xf32>
    %6 = vector.multi_reduction <add>, %5, %cst [1, 2, 3] : vector<1x4x15x16xf32> to vector<1xf32>
    %7 = vector.shape_cast %6 : vector<1xf32> to vector<1x1x1x1xf32>
    %8 = vector.extract %7[0, 0, 0, 0] : f32 from vector<1x1x1x1xf32>
    %9 = vector.broadcast %8 : f32 to vector<1x8x128xf32>
    %c0_2 = arith.constant 0 : index
    %c0_3 = arith.constant 0 : index
    %c0_4 = arith.constant 0 : index
    %10 = vector.load %arg2[%c0_2, %c0_3, %c0_4] : memref<1x8x128xf32, #tpu.memory_space<vmem>>, vector<1x8x128xf32>
    tpu.vector_store %arg2[%c0_2, %c0_3, %c0_4], %9 {strides = array<i32>} : memref<1x8x128xf32, #tpu.memory_space<vmem>>, vector<1x8x128xf32>,
    %11 = vector.extract_strided_slice %0 {offsets = [0, 0, 1], sizes = [4, 16, 15], strides = [1, 1, 1]} : vector<4x16x16xf32> to vector<4x16x15xf32>
    %12 = vector.extract_strided_slice %0 {offsets = [0, 0, 0], sizes = [4, 16, 15], strides = [1, 1, 1]} : vector<4x16x16xf32> to vector<4x16x15xf32>
    %13 = arith.subf %11, %12 : vector<4x16x15xf32>
    %14 = math.absf %13 : vector<4x16x15xf32>
    %15 = vector.shape_cast %14 : vector<4x16x15xf32> to vector<1x4x16x15xf32>
    %cst_5 = arith.constant dense<0.000000e+00> : vector<1xf32>
    %16 = vector.multi_reduction <add>, %15, %cst_5 [1, 2, 3] : vector<1x4x16x15xf32> to vector<1xf32>
    %17 = vector.shape_cast %16 : vector<1xf32> to vector<1x1x1x1xf32>
    %18 = vector.extract %17[0, 0, 0, 0] : f32 from vector<1x1x1x1xf32>
    %19 = vector.broadcast %18 : f32 to vector<1x8x128xf32>
    %c0_6 = arith.constant 0 : index
    %c0_7 = arith.constant 0 : index
    %c0_8 = arith.constant 0 : index
    %20 = vector.load %arg3[%c0_6, %c0_7, %c0_8] : memref<1x8x128xf32, #tpu.memory_space<vmem>>, vector<1x8x128xf32>
    tpu.vector_store %arg3[%c0_6, %c0_7, %c0_8], %19 {strides = array<i32>} : memref<1x8x128xf32, #tpu.memory_space<vmem>>, vector<1x8x128xf32>,
    return
  }
  func.func @transform_0(%arg0: i32) -> (i32, i32, i32) {
    %c0_i32 = arith.constant 0 : i32
    %c0_i32_0 = arith.constant 0 : i32
    %c0_i32_1 = arith.constant 0 : i32
    return %arg0, %c0_i32, %c0_i32_0 : i32, i32, i32
  }
  func.func @transform_1(%arg0: i32) -> (i32, i32, i32) {
    %c0_i32 = arith.constant 0 : i32
    %c0_i32_0 = arith.constant 0 : i32
    %c0_i32_1 = arith.constant 0 : i32
    return %arg0, %c0_i32, %c0_i32_0 : i32, i32, i32
  }
  func.func @transform_2(%arg0: i32) -> (i32, i32, i32) {
    %c0_i32 = arith.constant 0 : i32
    %c0_i32_0 = arith.constant 0 : i32
    %c0_i32_1 = arith.constant 0 : i32
    return %arg0, %c0_i32, %c0_i32_0 : i32, i32, i32
  }
}

</mosaic_0001>

<llo_original>
// kernel: tpu_custom_call.1
$region0: #{tpu_custom_call.1}
  #allocation0 [shape = 'u32[]', space=smem, size = 0x4, offset = 0x4, fixed_abs, tag = 'smem constant byte address 0x4 - core index']
  #allocation1 [shape = 'u32[72,128]{1,0:T(1,128)}', space=vmem, size = 0x9000, scoped, tag = 'internal scratch']
  %s0 = inlined_call_operand.hbm [shape: f32[8,16,16], index: 0, kind: input, shape index: {}]
  %s1 = inlined_call_operand.hbm [shape: f32[2,8,128], index: 1, kind: output, shape index: {0}]
  %s2 = inlined_call_operand.hbm [shape: f32[2,8,128], index: 2, kind: output, shape index: {1}]
  %3 = xla_tuple %s1, %s2
  %s4 = sld [smem:[#allocation0]]
  $region49: #{tpu_custom_call.1} parent=0
    _
  %s6 = ssub.s32 1, %s4
  %s7 = scalar_select 0, %s6, %s4
  $region1: #{tpu_custom_call.1} parent=0
    #allocation2 [shape = 'u8[65536]{0}', space=vmem, size = 0x10000, scoped, tag = 'input window, operand 0']
    #allocation3 [shape = 's32[2]{0}', space=sflag, size = 0x8, scoped, tag = 'scoped memory for tpu_custom_call.1']
    #allocation4 [shape = 's32[2]{0}', space=sflag, size = 0x8, scoped, tag = 'scoped memory for tpu_custom_call.1']
    #allocation5 [shape = 'u8[8192]{0}', space=vmem, size = 0x2000, scoped, tag = 'output window, operand 0']
    #allocation6 [shape = 'u8[8192]{0}', space=vmem, size = 0x2000, scoped, tag = 'output window, operand 1']
    #allocation7 [shape = 's32[2]{0}', space=sflag, size = 0x8, scoped, tag = 'scoped memory for tpu_custom_call.1']
    %8 = vsyncpa [#allocation3], 0
    %s9 = scalar_lea.sflag [#allocation3], 1
    %10 = vsyncpa %s9, 0
    %11 = vsyncpa [#allocation4], 0
    %s12 = scalar_lea.sflag [#allocation4], 1
    %13 = vsyncpa %s12, 0
    %14 = vsyncpa [#allocation7], 0
    %s15 = scalar_lea.sflag [#allocation7], 1
    %16 = vsyncpa %s15, 0
    loop: start=0, step=1, limit=4
    $region2: #{tpu_custom_call.1} parent=1 // loop_pre_header
      _
    $region3: #{tpu_custom_call.1} parent=1 // loop_header
      %s18 = sphi 0, %s22
      %p19 = scmp.ge.s32.totalorder %s18, 4
      %s28 = sphi 0, %s30
      %s31 = sphi 0, %s28
      %s32 = sphi 0, %s31
      %s48 = sphi 0, %s32
      %s54 = sphi 0, %s56
      %s57 = sphi 0, %s54
      %s58 = sphi 0, %s57
      %s74 = sphi 0, %s58
      %s80 = sphi 0, %s82
      %s83 = sphi 0, %s80
      %s84 = sphi 0, %s83
      %s100 = sphi 0, %s84
    $region4: #{tpu_custom_call.1} parent=1 // loop_header_branch
      %21 = sbr.rel (%p19) target = $region8
    $region5: #{tpu_custom_call.1} parent=1 // loop_body
      %s23 = ssub.s32 %s18, 1
      %s24 = ssub.s32 %s18, 2
      %s25 = sadd.s32 %s18, 1
      %s26 = ssub.s32 %s18, %s25
      %p27 = scmp.eq.s32.totalorder %s26, 0
      %s29 = sadd.s32 %s28, 1
      %s30 = scalar_select %p27, %s28, %s29
      %p33 = pneg %p27
      %p34 = scmp.eq.s32.totalorder %s18, 1
      %p35 = por %p33, %p34
      %p36 = scmp.ne.s32.totalorder %s28, %s31
      %p37 = scmp.eq.s32.totalorder %s18, 0
      %p38 = por %p36, %p37
      %p39 = scmp.ne.s32.totalorder %s28, %s31
      %p40 = scmp.eq.s32.totalorder %s23, 1
      %p41 = por %p39, %p40
      %p42 = scmp.ne.s32.totalorder %s31, %s32
      %p43 = scmp.eq.s32.totalorder %s23, 0
      %p44 = por %p42, %p43
      %p45 = scmp.ne.s32.totalorder %s31, %s32
      %p46 = scmp.eq.s32.totalorder %s24, 1
      %p47 = por %p45, %p46
      %p49 = scmp.ne.s32.totalorder %s32, %s48
      %p50 = scmp.eq.s32.totalorder %s24, 0
      %p51 = por %p49, %p50
      %s52 = ssub.s32 %s18, %s25
      %p53 = scmp.eq.s32.totalorder %s52, 0
      %s55 = sadd.s32 %s54, 1
      %s56 = scalar_select %p53, %s54, %s55
      %p59 = pneg %p53
      %p60 = scmp.eq.s32.totalorder %s18, 1
      %p61 = por %p59, %p60
      %p62 = scmp.ne.s32.totalorder %s54, %s57
      %p63 = scmp.eq.s32.totalorder %s18, 0
      %p64 = por %p62, %p63
      %p65 = scmp.ne.s32.totalorder %s54, %s57
      %p66 = scmp.eq.s32.totalorder %s23, 1
      %p67 = por %p65, %p66
      %p68 = scmp.ne.s32.totalorder %s57, %s58
      %p69 = scmp.eq.s32.totalorder %s23, 0
      %p70 = por %p68, %p69
      %p71 = scmp.ne.s32.totalorder %s57, %s58
      %p72 = scmp.eq.s32.totalorder %s24, 1
      %p73 = por %p71, %p72
      %p75 = scmp.ne.s32.totalorder %s58, %s74
      %p76 = scmp.eq.s32.totalorder %s24, 0
      %p77 = por %p75, %p76
      %s78 = ssub.s32 %s18, %s25
      %p79 = scmp.eq.s32.totalorder %s78, 0
      %s81 = sadd.s32 %s80, 1
      %s82 = scalar_select %p79, %s80, %s81
      %p85 = pneg %p79
      %p86 = scmp.eq.s32.totalorder %s18, 1
      %p87 = por %p85, %p86
      %p88 = scmp.ne.s32.totalorder %s80, %s83
      %p89 = scmp.eq.s32.totalorder %s18, 0
      %p90 = por %p88, %p89
      %p91 = scmp.ne.s32.totalorder %s80, %s83
      %p92 = scmp.eq.s32.totalorder %s23, 1
      %p93 = por %p91, %p92
      %p94 = scmp.ne.s32.totalorder %s83, %s84
      %p95 = scmp.eq.s32.totalorder %s23, 0
      %p96 = por %p94, %p95
      %p97 = scmp.ne.s32.totalorder %s83, %s84
      %p98 = scmp.eq.s32.totalorder %s24, 1
      %p99 = por %p97, %p98
      %p101 = scmp.ne.s32.totalorder %s84, %s100
      %p102 = scmp.eq.s32.totalorder %s24, 0
      %p103 = por %p101, %p102
      %p104 = scmp.le.s32.totalorder 1, %s18
      %p105 = scmp.lt.s32.totalorder %s18, 3
      %p106 = pnand %p104, %p105
      %p107 = pneg %p106
      // Predicated region
      $region9: #{tpu_custom_call.1} parent=5 // pred_check
        _
      $region10: #{tpu_custom_call.1} parent=5 // pred_check_branch
        %109 = sbr.rel (%p106) target = $region12
      $region11: #{tpu_custom_call.1} parent=5 // pred_region
        %s110 = ssub.s32 %s18, 1
      $region12: #{tpu_custom_call.1} parent=5 // pred_fallthru
        _
      %p111 = scmp.lt.s32.totalorder %s18, 2
      // Predicated region
      $region13: #{tpu_custom_call.1} parent=5 // pred_check
        %p112 = pneg %p111
      $region14: #{tpu_custom_call.1} parent=5 // pred_check_branch
        %114 = sbr.rel (%p112) target = $region16
      $region15: #{tpu_custom_call.1} parent=5 // pred_region
        // Predicated region
        $region17: #{tpu_custom_call.1} parent=15 // pred_check
          %p115 = pneg %p38
        $region18: #{tpu_custom_call.1} parent=15 // pred_check_branch
          %117 = sbr.rel (%p115) target = $region20
        $region19: #{tpu_custom_call.1} parent=15 // pred_region
          %s118 = sand.u32 %s28, 1
          %s119 = scalar_lea.sflag [#allocation3], %s118
          %s120 = sand.u32 %s28, 1
          %s121 = smul.addr %s120, 64
          %s122 = scalar_lea.vmem [#allocation2], %s121
          %s123 = smul.u32 4, %s18
          %125 = vsyncadd %s119, 0
          %s126 = smul.addr %s123, 2
          %s127 = smul.addr %s126, 8
          %s128 = scalar_lea.hbm %s0, %s127
          %s129 = sshll.u32 %s128, 4
          %s130 = int_to_ptr.hbm [resolvable:$true] %s129
          %s131 = sshll.u32 %s122, 4
          %s132 = int_to_ptr.vmem [resolvable:$true] %s131
          %137 = dma.hbm_to_vmem [thread:$0]  %s130, 1024, %s132, %s119, 128, 128, 8
        $region20: #{tpu_custom_call.1} parent=15 // pred_fallthru
          _
      $region16: #{tpu_custom_call.1} parent=5 // pred_fallthru
        _
      %p138 = scmp.le.s32.totalorder 1, %s18
      %p139 = scmp.lt.s32.totalorder %s18, 3
      %p140 = pnand %p138, %p139
      %p141 = pneg %p140
      // Predicated region
      $region21: #{tpu_custom_call.1} parent=5 // pred_check
        _
      $region22: #{tpu_custom_call.1} parent=5 // pred_check_branch
        %143 = sbr.rel (%p140) target = $region24
      $region23: #{tpu_custom_call.1} parent=5 // pred_region
        %s144 = ssub.s32 %s18, 1
        %s145 = sand.u32 %s31, 1
        %s146 = scalar_lea.sflag [#allocation3], %s145
        %s147 = sand.u32 %s31, 1
        %s148 = smul.addr %s147, 64
        %s149 = scalar_lea.vmem [#allocation2], %s148
        // Predicated region
        $region25: #{tpu_custom_call.1} parent=23 // pred_check
          %p150 = pneg %p44
        $region26: #{tpu_custom_call.1} parent=23 // pred_check_branch
          %152 = sbr.rel (%p150) target = $region28
        $region27: #{tpu_custom_call.1} parent=23 // pred_region
          %154 = dma.done %s146, 1024
        $region28: #{tpu_custom_call.1} parent=23 // pred_fallthru
          _
        %s155 = sand.u32 %s31, 1
        %s156 = scalar_lea.sflag [#allocation3], %s155
        %s157 = sand.u32 %s31, 1
        %s158 = smul.addr %s157, 64
        %s159 = scalar_lea.vmem [#allocation2], %s158
        %p160 = pneg %p44
        %p161 = pneg %p41
        %p162 = pneg %p70
        %p163 = pneg %p67
        %s164 = sand.u32 %s57, 1
        %s165 = scalar_lea.sflag [#allocation4], %s164
        %s166 = sand.u32 %s57, 1
        %s167 = smul.addr %s166, 8
        %s168 = scalar_lea.vmem [#allocation5], %s167
        %p169 = pneg %p96
        %p170 = pneg %p93
        %s171 = sand.u32 %s83, 1
        %s172 = scalar_lea.sflag [#allocation7], %s171
        %s173 = sand.u32 %s83, 1
        %s174 = smul.addr %s173, 8
        %s175 = scalar_lea.vmem [#allocation6], %s174
        %s176 = smul.u32 4, %s23
        %v177 = vld [vmem:[%s149] sm:$0xff]
        %v178 = vld [vmem:[%s149 + $0x8] sm:$0xff]
        %v179 = vld [vmem:[%s149 + $0x10] sm:$0xff]
        %v180 = vld [vmem:[%s149 + $0x18] sm:$0xff]
        %v181 = vld [vmem:[%s149 + $0x20] sm:$0xff]
        %v182 = vld [vmem:[%s149 + $0x28] sm:$0xff]
        %v183 = vld [vmem:[%s149 + $0x30] sm:$0xff]
        %v184 = vld [vmem:[%s149 + $0x38] sm:$0xff]
        %vm193 = vcmask 1040384
        %v194 = vrot.slane %v177, 7
        %v195 = vrot.slane %v178, 7
        %v196 = vsel %vm193, %v194, %v195
        %v197 = vrot.slane %v179, 7
        %v198 = vrot.slane %v180, 7
        %v199 = vsel %vm193, %v197, %v198
        %v200 = vrot.slane %v181, 7
        %v201 = vrot.slane %v182, 7
        %v202 = vsel %vm193, %v200, %v201
        %v203 = vrot.slane %v183, 7
        %v204 = vrot.slane %v184, 7
        %v205 = vsel %vm193, %v203, %v204
        %v214 = vsub.f32 %v177, %v194
        %v215 = vsub.f32 %v178, %v196
        %v216 = vsub.f32 %v179, %v197
        %v217 = vsub.f32 %v180, %v199
        %v218 = vsub.f32 %v181, %v200
        %v219 = vsub.f32 %v182, %v202
        %v220 = vsub.f32 %v183, %v203
        %v221 = vsub.f32 %v184, %v205
        %v222 = vand.u32 2147483647, %v214
        %v223 = vand.u32 2147483647, %v215
        %v224 = vand.u32 2147483647, %v216
        %v225 = vand.u32 2147483647, %v217
        %v226 = vand.u32 2147483647, %v218
        %v227 = vand.u32 2147483647, %v219
        %v228 = vand.u32 2147483647, %v220
        %v229 = vand.u32 2147483647, %v221
        %vm238 = vcmask 1046528
        %v239 = vrot.slane %v222, 1
        %v240 = vrot.slane %v223, 1
        %v241 = vsel %vm238, %v239, %v240
        %v242 = vrot.slane %v224, 1
        %v243 = vrot.slane %v225, 1
        %v244 = vsel %vm238, %v242, %v243
        %v245 = vrot.slane %v226, 1
        %v246 = vrot.slane %v227, 1
        %v247 = vsel %vm238, %v245, %v246
        %v248 = vrot.slane %v228, 1
        %v249 = vrot.slane %v229, 1
        %v250 = vsel %vm238, %v248, %v249
        %vm259 = vcmask 130048
        %v260 = vsel %vm259, %v241, 0.0
        %vm261 = vcmask 129024
        %v262 = vsel %vm261, %v240, 0.0
        %v263 = vadd.f32 %v260, %v262
        %v264 = vsel %vm259, %v244, 0.0
        %v265 = vadd.f32 %v263, %v264
        %v266 = vsel %vm261, %v243, 0.0
        %v267 = vadd.f32 %v265, %v266
        %v268 = vsel %vm259, %v247, 0.0
        %v269 = vadd.f32 %v267, %v268
        %v270 = vsel %vm261, %v246, 0.0
        %v271 = vadd.f32 %v269, %v270
        %v272 = vsel %vm259, %v250, 0.0
        %v273 = vadd.f32 %v271, %v272
        %v274 = vsel %vm261, %v249, 0.0
        %v275 = vadd.f32 %v273, %v274
        %276 = vadd.xlane.f32.xlu0 %v275
        %v277 = vpop.xlane.xlu0 %276
        %v278 = vrot.slane %v277, 4
        %v279 = vadd.f32 %v277, %v278
        %v280 = vrot.slane %v279, 2
        %v281 = vadd.f32 %v279, %v280
        %v282 = vrot.slane %v281, 1
        %v283 = vadd.f32 %v281, %v282
        %s284 = vtos %v283
        %v285 = vstv %s284
        %286 = vst [vmem:[%s168] sm:$0xff] %v285
        %287 = vrot.lane.b32.xlu0 %v177, 1
        %v288 = vpop.permute.xlu0 %287
        %289 = vrot.lane.b32.xlu0 %v178, 1
        %v290 = vpop.permute.xlu0 %289
        %291 = vrot.lane.b32.xlu0 %v179, 1
        %v292 = vpop.permute.xlu0 %291
        %293 = vrot.lane.b32.xlu0 %v180, 1
        %v294 = vpop.permute.xlu0 %293
        %295 = vrot.lane.b32.xlu0 %v181, 1
        %v296 = vpop.permute.xlu0 %295
        %297 = vrot.lane.b32.xlu0 %v182, 1
        %v298 = vpop.permute.xlu0 %297
        %299 = vrot.lane.b32.xlu0 %v183, 1
        %v300 = vpop.permute.xlu0 %299
        %301 = vrot.lane.b32.xlu0 %v184, 1
        %v302 = vpop.permute.xlu0 %301
        %v311 = vsub.f32 %v177, %v288
        %v312 = vsub.f32 %v178, %v290
        %v313 = vsub.f32 %v179, %v292
        %v314 = vsub.f32 %v180, %v294
        %v315 = vsub.f32 %v181, %v296
        %v316 = vsub.f32 %v182, %v298
        %v317 = vsub.f32 %v183, %v300
        %v318 = vsub.f32 %v184, %v302
        %v319 = vand.u32 2147483647, %v311
        %v320 = vand.u32 2147483647, %v312
        %v321 = vand.u32 2147483647, %v313
        %v322 = vand.u32 2147483647, %v314
        %v323 = vand.u32 2147483647, %v315
        %v324 = vand.u32 2147483647, %v316
        %v325 = vand.u32 2147483647, %v317
        %v326 = vand.u32 2147483647, %v318
        %335 = vrot.lane.b32.xlu0 %v319, 127
        %v336 = vpop.permute.xlu0 %335
        %337 = vrot.lane.b32.xlu0 %v320, 127
        %v338 = vpop.permute.xlu0 %337
        %339 = vrot.lane.b32.xlu0 %v321, 127
        %v340 = vpop.permute.xlu0 %339
        %341 = vrot.lane.b32.xlu0 %v322, 127
        %v342 = vpop.permute.xlu0 %341
        %343 = vrot.lane.b32.xlu0 %v323, 127
        %v344 = vpop.permute.xlu0 %343
        %345 = vrot.lane.b32.xlu0 %v324, 127
        %v346 = vpop.permute.xlu0 %345
        %347 = vrot.lane.b32.xlu0 %v325, 127
        %v348 = vpop.permute.xlu0 %347
        %349 = vrot.lane.b32.xlu0 %v326, 127
        %v350 = vpop.permute.xlu0 %349
        %vm359 = vcmask 121856
        %v360 = vsel %vm359, %v336, 0.0
        %v361 = vsel %vm359, %v338, 0.0
        %v362 = vadd.f32 %v360, %v361
        %v363 = vsel %vm359, %v340, 0.0
        %v364 = vadd.f32 %v362, %v363
        %v365 = vsel %vm359, %v342, 0.0
        %v366 = vadd.f32 %v364, %v365
        %v367 = vsel %vm359, %v344, 0.0
        %v368 = vadd.f32 %v366, %v367
        %v369 = vsel %vm359, %v346, 0.0
        %v370 = vadd.f32 %v368, %v369
        %v371 = vsel %vm359, %v348, 0.0
        %v372 = vadd.f32 %v370, %v371
        %v373 = vsel %vm359, %v350, 0.0
        %v374 = vadd.f32 %v372, %v373
        %375 = vadd.xlane.f32.xlu0 %v374
        %v376 = vpop.xlane.xlu0 %375
        %v377 = vrot.slane %v376, 4
        %v378 = vadd.f32 %v376, %v377
        %v379 = vrot.slane %v378, 2
        %v380 = vadd.f32 %v378, %v379
        %v381 = vrot.slane %v380, 1
        %v382 = vadd.f32 %v380, %v381
        %s383 = vtos %v382
        %v384 = vstv %s383
        %385 = vst [vmem:[%s175] sm:$0xff] %v384
        %s386 = sand.u32 %s57, 1
        %s387 = scalar_lea.sflag [#allocation4], %s386
        %s388 = sand.u32 %s57, 1
        %s389 = smul.addr %s388, 8
        %s390 = scalar_lea.vmem [#allocation5], %s389
        %s391 = sand.u32 %s83, 1
        %s392 = scalar_lea.sflag [#allocation7], %s391
        %s393 = sand.u32 %s83, 1
        %s394 = smul.addr %s393, 8
        %s395 = scalar_lea.vmem [#allocation6], %s394
        // Predicated region
        $region29: #{tpu_custom_call.1} parent=23 // pred_check
          %p396 = pneg %p67
        $region30: #{tpu_custom_call.1} parent=23 // pred_check_branch
          %398 = sbr.rel (%p396) target = $region32
        $region31: #{tpu_custom_call.1} parent=23 // pred_region
          %400 = vsyncadd %s387, 0
          %s401 = smul.addr %s23, 8
          %s402 = scalar_lea.hbm %s1, %s401
          %s404 = sshll.u32 %s390, 4
          %s405 = int_to_ptr.vmem [resolvable:$true] %s404
          %s406 = sshll.u32 %s402, 4
          %s407 = int_to_ptr.hbm [resolvable:$true] %s406
          %409 = dma.vmem_to_hbm [thread:$0]  %s405, 128, %s407, %s387
        $region32: #{tpu_custom_call.1} parent=23 // pred_fallthru
          _
        // Predicated region
        $region33: #{tpu_custom_call.1} parent=23 // pred_check
          %p410 = pneg %p93
        $region34: #{tpu_custom_call.1} parent=23 // pred_check_branch
          %412 = sbr.rel (%p410) target = $region36
        $region35: #{tpu_custom_call.1} parent=23 // pred_region
          %414 = vsyncadd %s392, 0
          %s415 = smul.addr %s23, 8
          %s416 = scalar_lea.hbm %s2, %s415
          %s418 = sshll.u32 %s395, 4
          %s419 = int_to_ptr.vmem [resolvable:$true] %s418
          %s420 = sshll.u32 %s416, 4
          %s421 = int_to_ptr.hbm [resolvable:$true] %s420
          %423 = dma.vmem_to_hbm [thread:$0]  %s419, 128, %s421, %s392
        $region36: #{tpu_custom_call.1} parent=23 // pred_fallthru
          _
      $region24: #{tpu_custom_call.1} parent=5 // pred_fallthru
        _
      %p424 = scmp.le.s32.totalorder 2, %s18
      // Predicated region
      $region37: #{tpu_custom_call.1} parent=5 // pred_check
        %p425 = pneg %p424
      $region38: #{tpu_custom_call.1} parent=5 // pred_check_branch
        %427 = sbr.rel (%p425) target = $region40
      $region39: #{tpu_custom_call.1} parent=5 // pred_region
        %s428 = ssub.s32 %s18, 2
        // Predicated region
        $region41: #{tpu_custom_call.1} parent=39 // pred_check
          %p429 = pneg %p73
        $region42: #{tpu_custom_call.1} parent=39 // pred_check_branch
          %431 = sbr.rel (%p429) target = $region44
        $region43: #{tpu_custom_call.1} parent=39 // pred_region
          %s432 = sand.u32 %s58, 1
          %s433 = scalar_lea.sflag [#allocation4], %s432
          %s434 = sand.u32 %s58, 1
          %s435 = smul.addr %s434, 8
          %s436 = scalar_lea.vmem [#allocation5], %s435
          %438 = dma.done %s433, 128
        $region44: #{tpu_custom_call.1} parent=39 // pred_fallthru
          _
        // Predicated region
        $region45: #{tpu_custom_call.1} parent=39 // pred_check
          %p439 = pneg %p99
        $region46: #{tpu_custom_call.1} parent=39 // pred_check_branch
          %441 = sbr.rel (%p439) target = $region48
        $region47: #{tpu_custom_call.1} parent=39 // pred_region
          %s442 = sand.u32 %s84, 1
          %s443 = scalar_lea.sflag [#allocation7], %s442
          %s444 = sand.u32 %s84, 1
          %s445 = smul.addr %s444, 8
          %s446 = scalar_lea.vmem [#allocation6], %s445
          %448 = dma.done %s443, 128
        $region48: #{tpu_custom_call.1} parent=39 // pred_fallthru
          _
      $region40: #{tpu_custom_call.1} parent=5 // pred_fallthru
        _
    $region6: #{tpu_custom_call.1} parent=1 // loop_footer
      %s22 = sadd.s32 1, %s18
    $region7: #{tpu_custom_call.1} parent=1 // loop_footer_branch
      %17 = sbr.rel target = $region3
    $region8: #{tpu_custom_call.1} parent=1 // loop_exit
      _
    %449 = vsyncpa [#allocation3], 1
    %s450 = scalar_lea.sflag [#allocation3], 1
    %451 = vsyncpa %s450, 1
    %452 = vsyncpa [#allocation4], 1
    %s453 = scalar_lea.sflag [#allocation4], 1
    %454 = vsyncpa %s453, 1
    %455 = vsyncpa [#allocation7], 1
    %s456 = scalar_lea.sflag [#allocation7], 1
    %457 = vsyncpa %s456, 1

</llo_original>
